<compile_context>
chip_gen: v7x
topology: tpu7x:2x2x1
jax: 0.10.0
libtpu: 0.0.40
codegen_flags: <defaults>
</compile_context>

<pallas_src>
import functools

import jax
import jax.numpy as jnp
from jax.experimental import pallas as pl
from jax.experimental.pallas import tpu as pltpu

_LANE = 128
_SUBLANE = 8
_NEG_BIG = -1e30  # effectively -inf for softmax padding (avoids inf-inf NaN)


def _round_up(x, m):
    return ((x + m - 1) // m) * m


# ----------------------------------------------------------------------------
# Kernel
# ----------------------------------------------------------------------------
def _expr_decoder_kernel(z_ref, lib_ref, w1_ref, b1_ref, wo_ref, bo_ref,
                         *out_refs, n_out_block, gene_cell):
    if gene_cell:
        scale_ref, rate_ref, drop_ref, r_ref = out_refs
    else:
        scale_ref, rate_ref, drop_ref = out_refs
        r_ref = None

    # FCLayers (n_layers=1, dropout=0, no norm): Linear -> ReLU.
    # bf16 operands on the MXU, f32 accumulation; elementwise kept in f32.
    z = z_ref[...].astype(jnp.bfloat16)
    h = jnp.dot(z, w1_ref[...], preferred_element_type=jnp.float32) + b1_ref[...]
    h = jnp.maximum(h, 0.0).astype(jnp.bfloat16)

    # One fused matmul for the packed [scale | dropout | (r)] heads.
    heads = jnp.dot(h, wo_ref[...], preferred_element_type=jnp.float32) + bo_ref[...]

    # px_scale: numerically stable softmax over the gene axis (single pass,
    # full gene axis resident). Padded genes carry a -1e30 bias -> exp == 0.
    logits = heads[:, :n_out_block]
    m = jnp.max(logits, axis=-1, keepdims=True)
    e = jnp.exp(logits - m)
    inv = pl.reciprocal(jnp.sum(e, axis=-1, keepdims=True), approx=True)
    px_scale = e * inv

    scale_ref[...] = px_scale.astype(scale_ref.dtype)
    # px_rate = exp(library) * px_scale  (library: (tm, 1) broadcasts)
    rate_ref[...] = (jnp.exp(lib_ref[...]) * px_scale).astype(rate_ref.dtype)
    drop_ref[...] = heads[:, n_out_block:2 * n_out_block].astype(drop_ref.dtype)
    if gene_cell:
        r_ref[...] = heads[:, 2 * n_out_block:3 * n_out_block].astype(r_ref.dtype)


# ----------------------------------------------------------------------------
# Tiling / VMEM planning
# ----------------------------------------------------------------------------
def _plan_tiling(B, n_input, n_hidden, n_out_p, n_heads,
                 budget_bytes=40 * 2 ** 20):
    """Pick a batch tile (multiple of 8) so resident weights + double-buffered
    tiles + live intermediates stay under `budget_bytes` (headroom for v7x's
    64 MiB VMEM); return (tile_m, padded_batch, vmem_limit_bytes)."""
    # Resident (grid-invariant) blocks: bf16 weights + f32 biases.
    weight_bytes = (n_input * n_hidden * 2
                    + n_hidden * n_heads * n_out_p * 2
                    + (n_hidden + n_heads * n_out_p) * 4)
    n_outs = n_heads + 1  # scale, rate, dropout (+ r)

    def tile_bytes(tm):
        io = 2 * tm * (n_input + 1) * 4            # double-buffered z + library
        io += 2 * n_outs * tm * n_out_p * 4        # double-buffered output tiles
        live = 2 * tm * n_heads * n_out_p * 4      # heads/exp intermediates
        live += 10 * tm * n_hidden                 # h in f32 + bf16
        return io + live

    tm = 256
    while tm > _SUBLANE and weight_bytes + tile_bytes(tm) > budget_bytes:
        tm //= 2
    tm = max(tm, _SUBLANE)
    tm = min(tm, _round_up(max(B, 1), _SUBLANE))   # don't exceed (padded) batch
    tm = _round_up(tm, _SUBLANE)
    b_pad = _round_up(max(B, 1), tm)

    need = weight_bytes + tile_bytes(tm)
    vmem_limit = int(min(max(int(need * 1.5), 32 * 2 ** 20), 64 * 2 ** 20))
    return tm, b_pad, vmem_limit


# ----------------------------------------------------------------------------
# Wrapper
# ----------------------------------------------------------------------------
@functools.partial(jax.jit, static_argnames=("dispersion",))
def _expr_decoder_pallas(z, library, params, dispersion):
    B, n_input = z.shape
    n_hidden = params["w1"].shape[1]
    n_output = params["ws"].shape[1]
    gene_cell = dispersion == "gene-cell"
    n_heads = 3 if gene_cell else 2

    n_out_p = _round_up(n_output, _LANE)
    tm, b_pad, vmem_limit = _plan_tiling(B, n_input, n_hidden, n_out_p, n_heads)

    # ---- pack / pad parameters (weights stored pre-transposed as (in, out)) ---
    # TODO(synk): pre-pack/cast weights outside the per-call wrapper in a real
    # deployment instead of re-doing it on every call.
    def pad_cols(w, b, pad_bias_value):
        pad = n_out_p - n_output
        if pad:
            w = jnp.pad(w, ((0, 0), (0, pad)))
            b = jnp.pad(b, ((0, 0), (0, pad)), constant_values=pad_bias_value)
        return w, b

    ws, bs = pad_cols(params["ws"], params["bs"], _NEG_BIG)  # softmax ignores pad
    wd, bd = pad_cols(params["wd"], params["bd"], 0.0)
    w_list, b_list = [ws, wd], [bs, bd]
    if gene_cell:
        wr, br = pad_cols(params["wr"], params["br"], 0.0)
        w_list.append(wr)
        b_list.append(br)

    w1 = params["w1"].astype(jnp.bfloat16)
    b1 = params["b1"].astype(jnp.float32)
    wo = jnp.concatenate(w_list, axis=1).astype(jnp.bfloat16)
    bo = jnp.concatenate(b_list, axis=1).astype(jnp.float32)

    # ---- pad batch to a whole number of tiles --------------------------------
    if b_pad != B:
        z = jnp.pad(z, ((0, b_pad - B), (0, 0)))
        library = jnp.pad(library, ((0, b_pad - B), (0, 0)))

    grid = (b_pad // tm,)

    def row_spec(shape):
        return pl.BlockSpec(shape, lambda i: (i, 0))

    def resident_spec(shape):
        return pl.BlockSpec(shape, lambda i: (0, 0))

    in_specs = [
        row_spec((tm, n_input)),                   # z tile
        row_spec((tm, 1)),                         # library tile
        resident_spec((n_input, n_hidden)),        # W1 (resident across grid)
        resident_spec((1, n_hidden)),              # b1
        resident_spec((n_hidden, n_heads * n_out_p)),  # packed head weights
        resident_spec((1, n_heads * n_out_p)),     # packed head biases
    ]
    n_outs = n_heads + 1
    out_specs = tuple(row_spec((tm, n_out_p)) for _ in range(n_outs))
    out_shape = tuple(jax.ShapeDtypeStruct((b_pad, n_out_p), jnp.float32)
                      for _ in range(n_outs))

    kernel = functools.partial(_expr_decoder_kernel,
                               n_out_block=n_out_p, gene_cell=gene_cell)

    outs = pl.pallas_call(
        kernel,
        out_shape=out_shape,
        grid_spec=pltpu.PrefetchScalarGridSpec(
            num_scalar_prefetch=0,
            grid=grid,
            in_specs=in_specs,
            out_specs=out_specs,
        ),
        compiler_params=pltpu.CompilerParams(
            dimension_semantics=("parallel",),
            vmem_limit_bytes=vmem_limit,
        ),
    )(z, library, w1, b1, wo, bo)

    if gene_cell:
        scale_p, rate_p, drop_p, r_p = outs
        px_r = r_p[:B, :n_output]
    else:
        scale_p, rate_p, drop_p = outs
        px_r = None

    px_scale = scale_p[:B, :n_output]
    px_rate = rate_p[:B, :n_output]
    px_dropout = drop_p[:B, :n_output]
    return px_scale, px_r, px_rate, px_dropout


def expr_decoder_forward(dispersion, z, library, params):
    """Mirrors ExprDecoder.forward(dispersion, z, library)."""
    return _expr_decoder_pallas(z, library, params, dispersion)


# ----------------------------------------------------------------------------
# Reference & test harness
# ----------------------------------------------------------------------------
def init_params(key, n_input, n_hidden, n_output):
    """Deterministic synthetic parameters (Linear weights stored as (in, out))."""
    ks = jax.random.split(key, 8)

    def lin(kw, kb, fan_in, fan_out):
        bound = 1.0 / jnp.sqrt(fan_in)
        w = jax.random.uniform(kw, (fan_in, fan_out), jnp.float32, -bound, bound)
        b = jax.random.uniform(kb, (1, fan_out), jnp.float32, -bound, bound)
        return w, b

    w1, b1 = lin(ks[0], ks[1], n_input, n_hidden)   # FCLayers linear
    ws, bs = lin(ks[2], ks[3], n_hidden, n_output)  # px_scale_decoder linear
    wr, br = lin(ks[4], ks[5], n_hidden, n_output)  # px_r_decoder
    wd, bd = lin(ks[6], ks[7], n_hidden, n_output)  # px_dropout_decoder
    return {"w1": w1, "b1": b1, "ws": ws, "bs": bs,
            "wr": wr, "br": br, "wd": wd, "bd": bd}


def reference_forward(dispersion, z, library, p):
    h = jnp.maximum(z @ p["w1"] + p["b1"], 0.0)
    px_scale = jax.nn.softmax(h @ p["ws"] + p["bs"], axis=-1)
    px_dropout = h @ p["wd"] + p["bd"]
    px_rate = jnp.exp(library) * px_scale
    px_r = (h @ p["wr"] + p["br"]) if dispersion == "gene-cell" else None
    return px_scale, px_r, px_rate, px_dropout


def _check(dispersion, z, library, params):
    px_scale, px_r, px_rate, px_dropout = expr_decoder_forward(
        dispersion, z, library, params)
    jax.block_until_ready((px_scale, px_rate, px_dropout))
    r_scale, r_r, r_rate, r_drop = reference_forward(dispersion, z, library, params)
    # Tolerances relaxed vs. the f32 reference because the kernel uses bf16
    # matmul operands (f32 accumulate) and an approximate EUP reciprocal.
    assert jnp.allclose(px_scale, r_scale, atol=1e-3, rtol=5e-2)
    assert jnp.allclose(px_rate, r_rate, atol=2e-3, rtol=5e-2)
    assert jnp.allclose(px_dropout, r_drop, atol=3e-2, rtol=5e-2)
    if dispersion == "gene-cell":
        assert px_r is not None
        assert jnp.allclose(px_r, r_r, atol=3e-2, rtol=5e-2)
    else:
        assert px_r is None


if __name__ == "__main__":
    key = jax.random.PRNGKey(0)
    k_z, k_lib, k_p, k_z2, k_lib2, k_p2 = jax.random.split(key, 6)

    # 1) Small shapes consistent with the module: latent, hidden, genes.
    B, n_input, n_hidden, n_output = 8, 32, 128, 256
    z = jax.random.normal(k_z, (B, n_input), jnp.float32)
    library = jax.random.normal(k_lib, (B, 1), jnp.float32)
    params = init_params(k_p, n_input, n_hidden, n_output)
    _check("gene-cell", z, library, params)       # px_r path
    _check("gene", z, library, params)            # px_r head dropped at trace time

    # 2) Ragged shapes: batch not a multiple of 8, genes not a multiple of 128
    #    (exercises batch/gene padding and the -1e30 softmax padding).
    B2, n_output2 = 5, 200
    z2 = jax.random.normal(k_z2, (B2, n_input), jnp.float32)
    library2 = jax.random.normal(k_lib2, (B2, 1), jnp.float32)
    params2 = init_params(k_p2, n_input, n_hidden, n_output2)
    _check("gene", z2, library2, params2)

    print("KERNEL_OK")
</pallas_src>

<mosaic_0001>
module attributes {stable_mosaic.version = 11 : i64} {
  func.func @_expr_decoder_kernel(%arg0: i32, %arg1: memref<8x32xf32, #tpu.memory_space<vmem>>, %arg2: memref<8x1xf32, #tpu.memory_space<vmem>>, %arg3: memref<32x128xbf16, #tpu.memory_space<vmem>>, %arg4: memref<1x128xf32, #tpu.memory_space<vmem>>, %arg5: memref<128x768xbf16, #tpu.memory_space<vmem>>, %arg6: memref<1x768xf32, #tpu.memory_space<vmem>>, %arg7: memref<8x256xf32, #tpu.memory_space<vmem>>, %arg8: memref<8x256xf32, #tpu.memory_space<vmem>>, %arg9: memref<8x256xf32, #tpu.memory_space<vmem>>, %arg10: memref<8x256xf32, #tpu.memory_space<vmem>>) attributes {dimension_semantics = [#tpu.dimension_semantics<parallel>], iteration_bounds = array<i64: 1>, scalar_prefetch = 0 : i64, scratch_operands = 0 : i64, tpu.core_type = #tpu.core_type<tc>, window_params = [{transform_indices = @transform_0, window_bounds = array<i64: 8, 32>}, {transform_indices = @transform_1, window_bounds = array<i64: 8, 1>}, {pipeline_mode = #tpu.pipeline_mode<synchronous>, transform_indices = @transform_2, window_bounds = array<i64: 32, 128>}, {pipeline_mode = #tpu.pipeline_mode<synchronous>, transform_indices = @transform_3, window_bounds = array<i64: 1, 128>}, {pipeline_mode = #tpu.pipeline_mode<synchronous>, transform_indices = @transform_4, window_bounds = array<i64: 128, 768>}, {pipeline_mode = #tpu.pipeline_mode<synchronous>, transform_indices = @transform_5, window_bounds = array<i64: 1, 768>}, {transform_indices = @transform_6, window_bounds = array<i64: 8, 256>}, {transform_indices = @transform_7, window_bounds = array<i64: 8, 256>}, {transform_indices = @transform_8, window_bounds = array<i64: 8, 256>}, {transform_indices = @transform_9, window_bounds = array<i64: 8, 256>}]} {
    %c0 = arith.constant 0 : index
    %c0_0 = arith.constant 0 : index
    %0 = vector.load %arg1[%c0, %c0_0] : memref<8x32xf32, #tpu.memory_space<vmem>>, vector<8x32xf32>
    %1 = arith.truncf %0 : vector<8x32xf32> to vector<8x32xbf16>
    %c0_1 = arith.constant 0 : index
    %c0_2 = arith.constant 0 : index
    %2 = vector.load %arg3[%c0_1, %c0_2] : memref<32x128xbf16, #tpu.memory_space<vmem>>, vector<32x128xbf16>
    %cst = arith.constant dense<0.000000e+00> : vector<8x128xf32>
    %3 = tpu.matmul %1, %2, %cst {dimension_numbers = #tpu.dot_dimension_numbers<[1], [0], [0], [1], [0, 0, 1, 1], [], []>} : vector<8x32xbf16>, vector<32x128xbf16>, vector<8x128xf32> -> vector<8x128xf32>
    %c0_3 = arith.constant 0 : index
    %c0_4 = arith.constant 0 : index
    %4 = vector.load %arg4[%c0_3, %c0_4] : memref<1x128xf32, #tpu.memory_space<vmem>>, vector<1x128xf32>
    %5 = vector.broadcast %4 : vector<1x128xf32> to vector<8x128xf32>
    %6 = arith.addf %3, %5 : vector<8x128xf32>
    %cst_5 = arith.constant 0.000000e+00 : f32
    %7 = vector.broadcast %cst_5 : f32 to vector<8x128xf32>
    %8 = arith.maximumf %6, %7 : vector<8x128xf32>
    %9 = arith.truncf %8 : vector<8x128xf32> to vector<8x128xbf16>
    %c0_6 = arith.constant 0 : index
    %c0_7 = arith.constant 0 : index
    %10 = vector.load %arg5[%c0_6, %c0_7] : memref<128x768xbf16, #tpu.memory_space<vmem>>, vector<128x768xbf16>
    %cst_8 = arith.constant dense<0.000000e+00> : vector<8x768xf32>
    %11 = tpu.matmul %9, %10, %cst_8 {dimension_numbers = #tpu.dot_dimension_numbers<[1], [0], [0], [1], [0, 0, 1, 1], [], []>} : vector<8x128xbf16>, vector<128x768xbf16>, vector<8x768xf32> -> vector<8x768xf32>
    %c0_9 = arith.constant 0 : index
    %c0_10 = arith.constant 0 : index
    %12 = vector.load %arg6[%c0_9, %c0_10] : memref<1x768xf32, #tpu.memory_space<vmem>>, vector<1x768xf32>
    %13 = vector.broadcast %12 : vector<1x768xf32> to vector<8x768xf32>
    %14 = arith.addf %11, %13 : vector<8x768xf32>
    %15 = vector.extract_strided_slice %14 {offsets = [0, 0], sizes = [8, 256], strides = [1, 1]} : vector<8x768xf32> to vector<8x256xf32>
    %cst_11 = arith.constant dense<0xFF800000> : vector<8xf32>
    %16 = vector.multi_reduction <maximumf>, %15, %cst_11 [1] : vector<8x256xf32> to vector<8xf32>
    %17 = vector.shape_cast %16 : vector<8xf32> to vector<8x1xf32>
    %18 = vector.broadcast %17 : vector<8x1xf32> to vector<8x256xf32>
    %19 = arith.subf %15, %18 : vector<8x256xf32>
    %20 = math.exp %19 : vector<8x256xf32>
    %cst_12 = arith.constant dense<0.000000e+00> : vector<8xf32>
    %21 = vector.multi_reduction <add>, %20, %cst_12 [1] : vector<8x256xf32> to vector<8xf32>
    %22 = vector.shape_cast %21 : vector<8xf32> to vector<8x1xf32>
    %23 = tpu.reciprocal %22 {approx = true} : vector<8x1xf32> -> vector<8x1xf32>
    %24 = vector.broadcast %23 : vector<8x1xf32> to vector<8x256xf32>
    %25 = arith.mulf %20, %24 : vector<8x256xf32>
    %c0_13 = arith.constant 0 : index
    %c0_14 = arith.constant 0 : index
    %26 = vector.load %arg7[%c0_13, %c0_14] : memref<8x256xf32, #tpu.memory_space<vmem>>, vector<8x256xf32>
    tpu.vector_store %arg7[%c0_13, %c0_14], %25 {strides = array<i32>} : memref<8x256xf32, #tpu.memory_space<vmem>>, vector<8x256xf32>,
    %c0_15 = arith.constant 0 : index
    %c0_16 = arith.constant 0 : index
    %27 = vector.load %arg2[%c0_15, %c0_16] : memref<8x1xf32, #tpu.memory_space<vmem>>, vector<8x1xf32>
    %28 = math.exp %27 : vector<8x1xf32>
    %29 = vector.broadcast %28 : vector<8x1xf32> to vector<8x256xf32>
    %30 = arith.mulf %29, %25 : vector<8x256xf32>
    %c0_17 = arith.constant 0 : index
    %c0_18 = arith.constant 0 : index
    %31 = vector.load %arg8[%c0_17, %c0_18] : memref<8x256xf32, #tpu.memory_space<vmem>>, vector<8x256xf32>
    tpu.vector_store %arg8[%c0_17, %c0_18], %30 {strides = array<i32>} : memref<8x256xf32, #tpu.memory_space<vmem>>, vector<8x256xf32>,
    %32 = vector.extract_strided_slice %14 {offsets = [0, 256], sizes = [8, 256], strides = [1, 1]} : vector<8x768xf32> to vector<8x256xf32>
    %c0_19 = arith.constant 0 : index
    %c0_20 = arith.constant 0 : index
    %33 = vector.load %arg9[%c0_19, %c0_20] : memref<8x256xf32, #tpu.memory_space<vmem>>, vector<8x256xf32>
    tpu.vector_store %arg9[%c0_19, %c0_20], %32 {strides = array<i32>} : memref<8x256xf32, #tpu.memory_space<vmem>>, vector<8x256xf32>,
    %34 = vector.extract_strided_slice %14 {offsets = [0, 512], sizes = [8, 256], strides = [1, 1]} : vector<8x768xf32> to vector<8x256xf32>
    %c0_21 = arith.constant 0 : index
    %c0_22 = arith.constant 0 : index
    %35 = vector.load %arg10[%c0_21, %c0_22] : memref<8x256xf32, #tpu.memory_space<vmem>>, vector<8x256xf32>
    tpu.vector_store %arg10[%c0_21, %c0_22], %34 {strides = array<i32>} : memref<8x256xf32, #tpu.memory_space<vmem>>, vector<8x256xf32>,
    return
  }
  func.func @transform_0(%arg0: i32) -> (i32, i32) {
    %c0_i32 = arith.constant 0 : i32
    %c0_i32_0 = arith.constant 0 : i32
    return %arg0, %c0_i32 : i32, i32
  }
  func.func @transform_1(%arg0: i32) -> (i32, i32) {
    %c0_i32 = arith.constant 0 : i32
    %c0_i32_0 = arith.constant 0 : i32
    return %arg0, %c0_i32 : i32, i32
  }
  func.func @transform_2(%arg0: i32) -> (i32, i32) {
    %c0_i32 = arith.constant 0 : i32
    %c0_i32_0 = arith.constant 0 : i32
    %c0_i32_1 = arith.constant 0 : i32
    return %c0_i32, %c0_i32_0 : i32, i32
  }
  func.func @transform_3(%arg0: i32) -> (i32, i32) {
    %c0_i32 = arith.constant 0 : i32
    %c0_i32_0 = arith.constant 0 : i32
    %c0_i32_1 = arith.constant 0 : i32
    return %c0_i32, %c0_i32_0 : i32, i32
  }
  func.func @transform_4(%arg0: i32) -> (i32, i32) {
    %c0_i32 = arith.constant 0 : i32
    %c0_i32_0 = arith.constant 0 : i32
    %c0_i32_1 = arith.constant 0 : i32
    return %c0_i32, %c0_i32_0 : i32, i32
  }
  func.func @transform_5(%arg0: i32) -> (i32, i32) {
    %c0_i32 = arith.constant 0 : i32
    %c0_i32_0 = arith.constant 0 : i32
    %c0_i32_1 = arith.constant 0 : i32
    return %c0_i32, %c0_i32_0 : i32, i32
  }
  func.func @transform_6(%arg0: i32) -> (i32, i32) {
    %c0_i32 = arith.constant 0 : i32
    %c0_i32_0 = arith.constant 0 : i32
    return %arg0, %c0_i32 : i32, i32
  }
  func.func @transform_7(%arg0: i32) -> (i32, i32) {
    %c0_i32 = arith.constant 0 : i32
    %c0_i32_0 = arith.constant 0 : i32
    return %arg0, %c0_i32 : i32, i32
  }
  func.func @transform_8(%arg0: i32) -> (i32, i32) {
    %c0_i32 = arith.constant 0 : i32
    %c0_i32_0 = arith.constant 0 : i32
    return %arg0, %c0_i32 : i32, i32
  }
  func.func @transform_9(%arg0: i32) -> (i32, i32) {
    %c0_i32 = arith.constant 0 : i32
    %c0_i32_0 = arith.constant 0 : i32
    return %arg0, %c0_i32 : i32, i32
  }
}

</mosaic_0001>

<llo_original>
// kernel: _expr_decoder_pallas.1
$region0: #{_expr_decoder_pallas.1}
  #allocation0 [shape = 'u32[]', space=smem, size = 0x4, offset = 0x4, fixed_abs, tag = 'smem constant byte address 0x4 - core index']
  #allocation1 [shape = 'u32[144,128]{1,0:T(1,128)}', space=vmem, size = 0x12000, scoped, tag = 'internal scratch']
  %s0 = inlined_call_operand.vmem [shape: f32[8,32], index: 0, kind: input, shape index: {}]
  %s1 = inlined_call_operand.vmem [shape: f32[8,1], index: 1, kind: input, shape index: {}]
  %s2 = inlined_call_operand.vmem [shape: bf16[32,128], index: 2, kind: input, shape index: {}]
  %s3 = inlined_call_operand.vmem [shape: f32[1,128], index: 3, kind: input, shape index: {}]
  %s4 = inlined_call_operand.vmem [shape: bf16[128,768], index: 4, kind: input, shape index: {}]
  %s5 = inlined_call_operand.vmem [shape: f32[1,768], index: 5, kind: input, shape index: {}]
  %s6 = inlined_call_operand.hbm [shape: f32[8,256], index: 6, kind: output, shape index: {0}]
  %s7 = inlined_call_operand.hbm [shape: f32[8,256], index: 7, kind: output, shape index: {1}]
  %s8 = inlined_call_operand.hbm [shape: f32[8,256], index: 8, kind: output, shape index: {2}]
  %s9 = inlined_call_operand.hbm [shape: f32[8,256], index: 9, kind: output, shape index: {3}]
  %10 = xla_tuple %s6, %s7, %s8, %s9
  %s11 = sld [smem:[#allocation0]]
  $region58: #{_expr_decoder_pallas.1} parent=0
    _
  %s13 = ssub.s32 1, %s11
  %s14 = scalar_select 0, %s13, %s11
  $region1: #{_expr_decoder_pallas.1} parent=0
    #allocation2 [shape = 'u8[8192]{0}', space=vmem, size = 0x2000, scoped, tag = 'output window, operand 0, single buffered']
    #allocation3 [shape = 's32[1]{0}', space=sflag, size = 0x4, scoped, tag = 'scoped memory for _expr_decoder_pallas.1']
    #allocation4 [shape = 'u8[8192]{0}', space=vmem, size = 0x2000, scoped, tag = 'output window, operand 1, single buffered']
    #allocation5 [shape = 's32[1]{0}', space=sflag, size = 0x4, scoped, tag = 'scoped memory for _expr_decoder_pallas.1']
    #allocation6 [shape = 'u8[8192]{0}', space=vmem, size = 0x2000, scoped, tag = 'output window, operand 2, single buffered']
    #allocation7 [shape = 'u8[8192]{0}', space=vmem, size = 0x2000, scoped, tag = 'output window, operand 3, single buffered']
    #allocation8 [shape = 's32[1]{0}', space=sflag, size = 0x4, scoped, tag = 'scoped memory for _expr_decoder_pallas.1']
    %15 = vsyncpa [#allocation3], 0
    %16 = vsyncpa [#allocation5], 0
    %17 = vsyncpa [#allocation8], 0
    // Predicated region
    $region2: #{_expr_decoder_pallas.1} parent=1 // pred_check
      _
    $region3: #{_expr_decoder_pallas.1} parent=1 // pred_check_branch
      %19 = sbr.rel (0) target = $region5
    $region4: #{_expr_decoder_pallas.1} parent=1 // pred_region
      _
    $region5: #{_expr_decoder_pallas.1} parent=1 // pred_fallthru
      _
    // Predicated region
    $region6: #{_expr_decoder_pallas.1} parent=1 // pred_check
      _
    $region7: #{_expr_decoder_pallas.1} parent=1 // pred_check_branch
      %21 = sbr.rel (0) target = $region9
    $region8: #{_expr_decoder_pallas.1} parent=1 // pred_region
      _
    $region9: #{_expr_decoder_pallas.1} parent=1 // pred_fallthru
      _
    // Predicated region
    $region10: #{_expr_decoder_pallas.1} parent=1 // pred_check
      _
    $region11: #{_expr_decoder_pallas.1} parent=1 // pred_check_branch
      %23 = sbr.rel (0) target = $region13
    $region12: #{_expr_decoder_pallas.1} parent=1 // pred_region
      _
    $region13: #{_expr_decoder_pallas.1} parent=1 // pred_fallthru
      _
    // Predicated region
    $region14: #{_expr_decoder_pallas.1} parent=1 // pred_check
      _
    $region15: #{_expr_decoder_pallas.1} parent=1 // pred_check_branch
      %25 = sbr.rel (0) target = $region17
    $region16: #{_expr_decoder_pallas.1} parent=1 // pred_region
      _
    $region17: #{_expr_decoder_pallas.1} parent=1 // pred_fallthru
      _
    // Predicated region
    $region18: #{_expr_decoder_pallas.1} parent=1 // pred_check
      _
    $region19: #{_expr_decoder_pallas.1} parent=1 // pred_check_branch
      %27 = sbr.rel (0) target = $region21
    $region20: #{_expr_decoder_pallas.1} parent=1 // pred_region
      _
    $region21: #{_expr_decoder_pallas.1} parent=1 // pred_fallthru
      _
    // Predicated region
    $region22: #{_expr_decoder_pallas.1} parent=1 // pred_check
      _
    $region23: #{_expr_decoder_pallas.1} parent=1 // pred_check_branch
      %29 = sbr.rel (0) target = $region25
    $region24: #{_expr_decoder_pallas.1} parent=1 // pred_region
      _
    $region25: #{_expr_decoder_pallas.1} parent=1 // pred_fallthru
      _
    %v31 = vld [vmem:[%s0] sm:$0xff]
    %v32 = vpack.c.bf16 %v31, %v31
    %v33 = vld [vmem:[%s2] sm:$0xf]
    %v34 = vld [vmem:[%s2 + $0x4] sm:$0xf]
    %v35 = vld [vmem:[%s2 + $0x8] sm:$0xf]
    %v36 = vld [vmem:[%s2 + $0xc] sm:$0xf]
    %v37 = vld [vmem:[%s3] sm:$0x1]
    %v39 = vlaneseq
    %v40 = vshrl.u32 %v39, 7
    %v41 = vsub.s32 0, %v40
    %v42 = vrot.slane %v37, %v41
    %v48 = vunpack.c.l.b16 %v33
    %v49 = vunpack.c.l.b16 %v34
    %v50 = vunpack.c.l.b16 %v35
    %v51 = vunpack.c.l.b16 %v36
    %v52 = vpack.c.b16 %v49, %v48
    %v53 = vpack.c.b16 %v51, %v50
    %vm56 = vcmask 261120
    %v58 = vsel %vm56, %v32, 0
    %60 = vmatprep.subr.bf16.mxu0 0
    %61 = vmatpush1.bf16.msra.mxu0 %v52
    %62 = vmatprep.subr.bf16.mxu0 0
    %63 = vmatpush1.bf16.msra.mxu0 %v53
    %64 = vmatprep.subr.bf16.mxu0 0
    %65 = vmatpush1.bf16.msra.mxu0 0
    %66 = vmatprep.subr.bf16.mxu0 0
    %67 = vmatpush1.bf16.msra.mxu0 0
    %68 = vmatprep.subr.bf16.mxu0 0
    %69 = vmatpush1.bf16.msra.mxu0 0
    %70 = vmatprep.subr.bf16.mxu0 0
    %71 = vmatpush1.bf16.msra.mxu0 0
    %72 = vmatprep.subr.bf16.mxu0 0
    %73 = vmatpush1.bf16.msra.mxu0 0
    %74 = vmatprep.subr.bf16.mxu0 0
    %75 = vmatpush1.bf16.msra.mxu0 0
    %76 = vmatprep.subr.bf16.mxu0 0
    %77 = vmatpush1.bf16.msra.mxu0 0
    %78 = vmatprep.subr.bf16.mxu0 0
    %79 = vmatpush1.bf16.msra.mxu0 0
    %80 = vmatprep.subr.bf16.mxu0 0
    %81 = vmatpush1.bf16.msra.mxu0 0
    %82 = vmatprep.subr.bf16.mxu0 0
    %83 = vmatpush1.bf16.msra.mxu0 0
    %84 = vmatprep.subr.bf16.mxu0 0
    %85 = vmatpush1.bf16.msra.mxu0 0
    %86 = vmatprep.subr.bf16.mxu0 0
    %87 = vmatpush1.bf16.msra.mxu0 0
    %88 = vmatprep.subr.bf16.mxu0 0
    %89 = vmatpush1.bf16.msra.mxu0 0
    %90 = vmatprep.subr.bf16.mxu0 0
    %91 = vmatpush1.bf16.msra.mxu0 0
    %92 = vmatprep.mubr.bf16.mxu0 0
    %93 = vmatmul.mubr.bf16.gmra.mrb[0].mxu0 %v58
    %v94 = vpop.f32.mrb[0].mxu0
    %v95 = vadd.f32 %v42, %v94
    %v96 = vpop.f32.mrb[0].mxu0
    %v97 = vpop.f32.mrb[0].mxu0
    %v98 = vpop.f32.mrb[0].mxu0
    %99 = vdwg.mxu0
    %v100 = vmax.f32 %v95, 0.0
    %v101 = vpack.c.bf16 %v100, %v100
    %v102 = vld [vmem:[%s4] sm:$0xff]
    %v103 = vld [vmem:[%s4 + $0x8] sm:$0xff]
    %v104 = vld [vmem:[%s4 + $0x10] sm:$0xff]
    %v105 = vld [vmem:[%s4 + $0x18] sm:$0xff]
    %v106 = vld [vmem:[%s4 + $0x20] sm:$0xff]
    %v107 = vld [vmem:[%s4 + $0x28] sm:$0xff]
    %v108 = vld [vmem:[%s4 + $0x30] sm:$0xff]
    %v109 = vld [vmem:[%s4 + $0x38] sm:$0xff]
    %v110 = vld [vmem:[%s4 + $0x40] sm:$0xff]
    %v111 = vld [vmem:[%s4 + $0x48] sm:$0xff]
    %v112 = vld [vmem:[%s4 + $0x50] sm:$0xff]
    %v113 = vld [vmem:[%s4 + $0x58] sm:$0xff]
    %v114 = vld [vmem:[%s4 + $0x60] sm:$0xff]
    %v115 = vld [vmem:[%s4 + $0x68] sm:$0xff]
    %v116 = vld [vmem:[%s4 + $0x70] sm:$0xff]
    %v117 = vld [vmem:[%s4 + $0x78] sm:$0xff]
    %v118 = vld [vmem:[%s4 + $0x80] sm:$0xff]
    %v119 = vld [vmem:[%s4 + $0x88] sm:$0xff]
    %v120 = vld [vmem:[%s4 + $0x90] sm:$0xff]
    %v121 = vld [vmem:[%s4 + $0x98] sm:$0xff]
    %v122 = vld [vmem:[%s4 + $0xa0] sm:$0xff]
    %v123 = vld [vmem:[%s4 + $0xa8] sm:$0xff]
    %v124 = vld [vmem:[%s4 + $0xb0] sm:$0xff]
    %v125 = vld [vmem:[%s4 + $0xb8] sm:$0xff]
    %v126 = vld [vmem:[%s4 + $0xc0] sm:$0xff]
    %v127 = vld [vmem:[%s4 + $0xc8] sm:$0xff]
    %v128 = vld [vmem:[%s4 + $0xd0] sm:$0xff]
    %v129 = vld [vmem:[%s4 + $0xd8] sm:$0xff]
    %v130 = vld [vmem:[%s4 + $0xe0] sm:$0xff]
    %v131 = vld [vmem:[%s4 + $0xe8] sm:$0xff]
    %v132 = vld [vmem:[%s4 + $0xf0] sm:$0xff]
    %v133 = vld [vmem:[%s4 + $0xf8] sm:$0xff]
    %v134 = vld [vmem:[%s4 + $0x100] sm:$0xff]
    %v135 = vld [vmem:[%s4 + $0x108] sm:$0xff]
    %v136 = vld [vmem:[%s4 + $0x110] sm:$0xff]
    %v137 = vld [vmem:[%s4 + $0x118] sm:$0xff]
    %v138 = vld [vmem:[%s4 + $0x120] sm:$0xff]
    %v139 = vld [vmem:[%s4 + $0x128] sm:$0xff]
    %v140 = vld [vmem:[%s4 + $0x130] sm:$0xff]
    %v141 = vld [vmem:[%s4 + $0x138] sm:$0xff]
    %v142 = vld [vmem:[%s4 + $0x140] sm:$0xff]
    %v143 = vld [vmem:[%s4 + $0x148] sm:$0xff]
    %v144 = vld [vmem:[%s4 + $0x150] sm:$0xff]
    %v145 = vld [vmem:[%s4 + $0x158] sm:$0xff]
    %v146 = vld [vmem:[%s4 + $0x160] sm:$0xff]
    %v147 = vld [vmem:[%s4 + $0x168] sm:$0xff]
    %v148 = vld [vmem:[%s4 + $0x170] sm:$0xff]
    %v149 = vld [vmem:[%s4 + $0x178] sm:$0xff]
    %v150 = vld [vmem:[%s5] sm:$0x3f]
    %v152 = vlaneseq
    %v153 = vshrl.u32 %v152, 7
    %v154 = vsub.s32 0, %v153
    %v155 = vrot.slane %v150, %v154
    %v156 = vlaneseq
    %v157 = vshrl.u32 %v156, 7
    %v158 = vsub.s32 1, %v157
    %v159 = vrot.slane %v150, %v158
    %v160 = vlaneseq
    %v161 = vshrl.u32 %v160, 7
    %v162 = vsub.s32 2, %v161
    %v163 = vrot.slane %v150, %v162
    %v164 = vlaneseq
    %v165 = vshrl.u32 %v164, 7
    %v166 = vsub.s32 3, %v165
    %v167 = vrot.slane %v150, %v166
    %v168 = vlaneseq
    %v169 = vshrl.u32 %v168, 7
    %v170 = vsub.s32 4, %v169
    %v171 = vrot.slane %v150, %v170
    %v172 = vlaneseq
    %v173 = vshrl.u32 %v172, 7
    %v174 = vsub.s32 5, %v173
    %v175 = vrot.slane %v150, %v174
    %v230 = vunpack.c.l.b16 %v102
    %v231 = vunpack.c.h.b16 %v102
    %v232 = vunpack.c.l.b16 %v103
    %v233 = vunpack.c.h.b16 %v103
    %v234 = vunpack.c.l.b16 %v104
    %v235 = vunpack.c.h.b16 %v104
    %v236 = vunpack.c.l.b16 %v105
    %v237 = vunpack.c.h.b16 %v105
    %v238 = vunpack.c.l.b16 %v106
    %v239 = vunpack.c.h.b16 %v106
    %v240 = vunpack.c.l.b16 %v107
    %v241 = vunpack.c.h.b16 %v107
    %v242 = vunpack.c.l.b16 %v108
    %v243 = vunpack.c.h.b16 %v108
    %v244 = vunpack.c.l.b16 %v109
    %v245 = vunpack.c.h.b16 %v109
    %v246 = vunpack.c.l.b16 %v110
    %v247 = vunpack.c.h.b16 %v110
    %v248 = vunpack.c.l.b16 %v111
    %v249 = vunpack.c.h.b16 %v111
    %v250 = vunpack.c.l.b16 %v112
    %v251 = vunpack.c.h.b16 %v112
    %v252 = vunpack.c.l.b16 %v113
    %v253 = vunpack.c.h.b16 %v113
    %v254 = vunpack.c.l.b16 %v114
    %v255 = vunpack.c.h.b16 %v114
    %v256 = vunpack.c.l.b16 %v115
    %v257 = vunpack.c.h.b16 %v115
    %v258 = vunpack.c.l.b16 %v116
    %v259 = vunpack.c.h.b16 %v116
    %v260 = vunpack.c.l.b16 %v117
    %v261 = vunpack.c.h.b16 %v117
    %v262 = vunpack.c.l.b16 %v118
    %v263 = vunpack.c.h.b16 %v118
    %v264 = vunpack.c.l.b16 %v119
    %v265 = vunpack.c.h.b16 %v119
    %v266 = vunpack.c.l.b16 %v120
    %v267 = vunpack.c.h.b16 %v120
    %v268 = vunpack.c.l.b16 %v121
    %v269 = vunpack.c.h.b16 %v121
    %v270 = vunpack.c.l.b16 %v122
    %v271 = vunpack.c.h.b16 %v122
    %v272 = vunpack.c.l.b16 %v123
    %v273 = vunpack.c.h.b16 %v123
    %v274 = vunpack.c.l.b16 %v124
    %v275 = vunpack.c.h.b16 %v124
    %v276 = vunpack.c.l.b16 %v125
    %v277 = vunpack.c.h.b16 %v125
    %v278 = vunpack.c.l.b16 %v126
    %v279 = vunpack.c.h.b16 %v126
    %v280 = vunpack.c.l.b16 %v127
    %v281 = vunpack.c.h.b16 %v127
    %v282 = vunpack.c.l.b16 %v128
    %v283 = vunpack.c.h.b16 %v128
    %v284 = vunpack.c.l.b16 %v129
    %v285 = vunpack.c.h.b16 %v129
    %v286 = vunpack.c.l.b16 %v130
    %v287 = vunpack.c.h.b16 %v130
    %v288 = vunpack.c.l.b16 %v131
    %v289 = vunpack.c.h.b16 %v131
    %v290 = vunpack.c.l.b16 %v132
    %v291 = vunpack.c.h.b16 %v132
    %v292 = vunpack.c.l.b16 %v133
    %v293 = vunpack.c.h.b16 %v133
    %v294 = vunpack.c.l.b16 %v134
    %v295 = vunpack.c.h.b16 %v134
    %v296 = vunpack.c.l.b16 %v135
    %v297 = vunpack.c.h.b16 %v135
    %v298 = vunpack.c.l.b16 %v136
    %v299 = vunpack.c.h.b16 %v136
    %v300 = vunpack.c.l.b16 %v137
    %v301 = vunpack.c.h.b16 %v137
    %v302 = vunpack.c.l.b16 %v138
    %v303 = vunpack.c.h.b16 %v138
    %v304 = vunpack.c.l.b16 %v139
    %v305 = vunpack.c.h.b16 %v139
    %v306 = vunpack.c.l.b16 %v140
    %v307 = vunpack.c.h.b16 %v140
    %v308 = vunpack.c.l.b16 %v141
    %v309 = vunpack.c.h.b16 %v141
    %v310 = vunpack.c.l.b16 %v142
    %v311 = vunpack.c.h.b16 %v142
    %v312 = vunpack.c.l.b16 %v143
    %v313 = vunpack.c.h.b16 %v143
    %v314 = vunpack.c.l.b16 %v144
    %v315 = vunpack.c.h.b16 %v144
    %v316 = vunpack.c.l.b16 %v145
    %v317 = vunpack.c.h.b16 %v145
    %v318 = vunpack.c.l.b16 %v146
    %v319 = vunpack.c.h.b16 %v146
    %v320 = vunpack.c.l.b16 %v147
    %v321 = vunpack.c.h.b16 %v147
    %v322 = vunpack.c.l.b16 %v148
    %v323 = vunpack.c.h.b16 %v148
    %v324 = vunpack.c.l.b16 %v149
    %v325 = vunpack.c.h.b16 %v149
    %v326 = vpack.c.b16 %v236, %v230
    %v327 = vpack.c.b16 %v237, %v231
    %v328 = vpack.c.b16 %v238, %v232
    %v329 = vpack.c.b16 %v239, %v233
    %v330 = vpack.c.b16 %v240, %v234
    %v331 = vpack.c.b16 %v241, %v235
    %v332 = vpack.c.b16 %v248, %v242
    %v333 = vpack.c.b16 %v249, %v243
    %v334 = vpack.c.b16 %v250, %v244
    %v335 = vpack.c.b16 %v251, %v245
    %v336 = vpack.c.b16 %v252, %v246
    %v337 = vpack.c.b16 %v253, %v247
    %v338 = vpack.c.b16 %v260, %v254
    %v339 = vpack.c.b16 %v261, %v255
    %v340 = vpack.c.b16 %v262, %v256
    %v341 = vpack.c.b16 %v263, %v257
    %v342 = vpack.c.b16 %v264, %v258
    %v343 = vpack.c.b16 %v265, %v259
    %v344 = vpack.c.b16 %v272, %v266
    %v345 = vpack.c.b16 %v273, %v267
    %v346 = vpack.c.b16 %v274, %v268
    %v347 = vpack.c.b16 %v275, %v269
    %v348 = vpack.c.b16 %v276, %v270
    %v349 = vpack.c.b16 %v277, %v271
    %v350 = vpack.c.b16 %v284, %v278
    %v351 = vpack.c.b16 %v285, %v279
    %v352 = vpack.c.b16 %v286, %v280
    %v353 = vpack.c.b16 %v287, %v281
    %v354 = vpack.c.b16 %v288, %v282
    %v355 = vpack.c.b16 %v289, %v283
    %v356 = vpack.c.b16 %v296, %v290
    %v357 = vpack.c.b16 %v297, %v291
    %v358 = vpack.c.b16 %v298, %v292
    %v359 = vpack.c.b16 %v299, %v293
    %v360 = vpack.c.b16 %v300, %v294
    %v361 = vpack.c.b16 %v301, %v295
    %v362 = vpack.c.b16 %v308, %v302
    %v363 = vpack.c.b16 %v309, %v303
    %v364 = vpack.c.b16 %v310, %v304
    %v365 = vpack.c.b16 %v311, %v305
    %v366 = vpack.c.b16 %v312, %v306
    %v367 = vpack.c.b16 %v313, %v307
    %v368 = vpack.c.b16 %v320, %v314
    %v369 = vpack.c.b16 %v321, %v315
    %v370 = vpack.c.b16 %v322, %v316
    %v371 = vpack.c.b16 %v323, %v317
    %v372 = vpack.c.b16 %v324, %v318
    %v373 = vpack.c.b16 %v325, %v319
    %422 = vmatprep.subr.bf16.mxu0 %v327
    %423 = vmatpush1.bf16.msra.mxu0 %v326
    %424 = vmatprep.subr.bf16.mxu0 %v333
    %425 = vmatpush1.bf16.msra.mxu0 %v332
    %426 = vmatprep.subr.bf16.mxu0 %v339
    %427 = vmatpush1.bf16.msra.mxu0 %v338
    %428 = vmatprep.subr.bf16.mxu0 %v345
    %429 = vmatpush1.bf16.msra.mxu0 %v344
    %430 = vmatprep.subr.bf16.mxu0 %v351
    %431 = vmatpush1.bf16.msra.mxu0 %v350
    %432 = vmatprep.subr.bf16.mxu0 %v357
    %433 = vmatpush1.bf16.msra.mxu0 %v356
    %434 = vmatprep.subr.bf16.mxu0 %v363
    %435 = vmatpush1.bf16.msra.mxu0 %v362
    %436 = vmatprep.subr.bf16.mxu0 %v369
    %437 = vmatpush1.bf16.msra.mxu0 %v368
    %438 = vmatprep.subr.bf16.mxu0 0
    %439 = vmatpush1.bf16.msra.mxu0 0
    %440 = vmatprep.subr.bf16.mxu0 0
    %441 = vmatpush1.bf16.msra.mxu0 0
    %442 = vmatprep.subr.bf16.mxu0 0
    %443 = vmatpush1.bf16.msra.mxu0 0
    %444 = vmatprep.subr.bf16.mxu0 0
    %445 = vmatpush1.bf16.msra.mxu0 0
    %446 = vmatprep.subr.bf16.mxu0 0
    %447 = vmatpush1.bf16.msra.mxu0 0
    %448 = vmatprep.subr.bf16.mxu0 0
    %449 = vmatpush1.bf16.msra.mxu0 0
    %450 = vmatprep.subr.bf16.mxu0 0
    %451 = vmatpush1.bf16.msra.mxu0 0
    %452 = vmatprep.subr.bf16.mxu0 0
    %453 = vmatpush1.bf16.msra.mxu0 0
    %454 = vmatprep.mubr.bf16.mxu0 0
    %455 = vmatmul.mubr.bf16.gmra.mrb[0].mxu0 %v101
    %v456 = vpop.f32.mrb[0].mxu0
    %v457 = vadd.f32 %v155, %v456
    %v458 = vpop.f32.mrb[0].mxu0
    %v459 = vadd.f32 %v159, %v458
    %v460 = vpop.f32.mrb[0].mxu0
    %v461 = vpop.f32.mrb[0].mxu0
    %462 = vdwg.mxu0
    %463 = vmatprep.subr.bf16.mxu0 %v329
    %464 = vmatpush1.bf16.msra.mxu0 %v328
    %465 = vmatprep.subr.bf16.mxu0 %v335
    %466 = vmatpush1.bf16.msra.mxu0 %v334
    %467 = vmatprep.subr.bf16.mxu0 %v341
    %468 = vmatpush1.bf16.msra.mxu0 %v340
    %469 = vmatprep.subr.bf16.mxu0 %v347
    %470 = vmatpush1.bf16.msra.mxu0 %v346
    %471 = vmatprep.subr.bf16.mxu0 %v353
    %472 = vmatpush1.bf16.msra.mxu0 %v352
    %473 = vmatprep.subr.bf16.mxu0 %v359
    %474 = vmatpush1.bf16.msra.mxu0 %v358
    %475 = vmatprep.subr.bf16.mxu0 %v365
    %476 = vmatpush1.bf16.msra.mxu0 %v364
    %477 = vmatprep.subr.bf16.mxu0 %v371
    %478 = vmatpush1.bf16.msra.mxu0 %v370
    %479 = vmatprep.subr.bf16.mxu0 0
    %480 = vmatpush1.bf16.msra.mxu0 0
    %481 = vmatprep.subr.bf16.mxu0 0
    %482 = vmatpush1.bf16.msra.mxu0 0
    %483 = vmatprep.subr.bf16.mxu0 0
    %484 = vmatpush1.bf16.msra.mxu0 0
    %485 = vmatprep.subr.bf16.mxu0 0
    %486 = vmatpush1.bf16.msra.mxu0 0
    %487 = vmatprep.subr.bf16.mxu0 0
    %488 = vmatpush1.bf16.msra.mxu0 0
    %489 = vmatprep.subr.bf16.mxu0 0
    %490 = vmatpush1.bf16.msra.mxu0 0
    %491 = vmatprep.subr.bf16.mxu0 0
    %492 = vmatpush1.bf16.msra.mxu0 0
    %493 = vmatprep.subr.bf16.mxu0 0
    %494 = vmatpush1.bf16.msra.mxu0 0
    %495 = vmatprep.mubr.bf16.mxu0 0
    %496 = vmatmul.mubr.bf16.gmra.mrb[0].mxu0 %v101
    %v497 = vpop.f32.mrb[0].mxu0
    %v498 = vadd.f32 %v163, %v497
    %v499 = vpop.f32.mrb[0].mxu0
    %v500 = vadd.f32 %v167, %v499
    %v501 = vpop.f32.mrb[0].mxu0
    %v502 = vpop.f32.mrb[0].mxu0
    %503 = vdwg.mxu0
    %504 = vmatprep.subr.bf16.mxu0 %v331
    %505 = vmatpush1.bf16.msra.mxu0 %v330
    %506 = vmatprep.subr.bf16.mxu0 %v337
    %507 = vmatpush1.bf16.msra.mxu0 %v336
    %508 = vmatprep.subr.bf16.mxu0 %v343
    %509 = vmatpush1.bf16.msra.mxu0 %v342
    %510 = vmatprep.subr.bf16.mxu0 %v349
    %511 = vmatpush1.bf16.msra.mxu0 %v348
    %512 = vmatprep.subr.bf16.mxu0 %v355
    %513 = vmatpush1.bf16.msra.mxu0 %v354
    %514 = vmatprep.subr.bf16.mxu0 %v361
    %515 = vmatpush1.bf16.msra.mxu0 %v360
    %516 = vmatprep.subr.bf16.mxu0 %v367
    %517 = vmatpush1.bf16.msra.mxu0 %v366
    %518 = vmatprep.subr.bf16.mxu0 %v373
    %519 = vmatpush1.bf16.msra.mxu0 %v372
    %520 = vmatprep.subr.bf16.mxu0 0
    %521 = vmatpush1.bf16.msra.mxu0 0
    %522 = vmatprep.subr.bf16.mxu0 0
    %523 = vmatpush1.bf16.msra.mxu0 0
    %524 = vmatprep.subr.bf16.mxu0 0
    %525 = vmatpush1.bf16.msra.mxu0 0
    %526 = vmatprep.subr.bf16.mxu0 0
    %527 = vmatpush1.bf16.msra.mxu0 0
    %528 = vmatprep.subr.bf16.mxu0 0
    %529 = vmatpush1.bf16.msra.mxu0 0
    %530 = vmatprep.subr.bf16.mxu0 0
    %531 = vmatpush1.bf16.msra.mxu0 0
    %532 = vmatprep.subr.bf16.mxu0 0
    %533 = vmatpush1.bf16.msra.mxu0 0
    %534 = vmatprep.subr.bf16.mxu0 0
    %535 = vmatpush1.bf16.msra.mxu0 0
    %536 = vmatprep.mubr.bf16.mxu0 0
    %537 = vmatmul.mubr.bf16.gmra.mrb[0].mxu0 %v101
    %v538 = vpop.f32.mrb[0].mxu0
    %v539 = vadd.f32 %v171, %v538
    %v540 = vpop.f32.mrb[0].mxu0
    %v541 = vadd.f32 %v175, %v540
    %v542 = vpop.f32.mrb[0].mxu0
    %v543 = vpop.f32.mrb[0].mxu0
    %544 = vdwg.mxu0
    %v545 = vmax.f32 %v457, %v459
    %546 = vmax.xlane.f32.xlu0 %v545
    %v547 = vpop.xlane.xlu0 %546
    %v548 = vsub.f32 %v457, %v547
    %v549 = vsub.f32 %v459, %v547
    %v550 = vmul.f32 %v548, 1.442695
    %v551 = vpow.pop %v550
    %v552 = vmul.f32 %v549, 1.442695
    %v553 = vpow.pop %v552
    %v554 = vadd.f32 %v551, %v553
    %555 = vadd.xlane.f32.xlu0 %v554
    %v556 = vpop.xlane.xlu0 %555
    %v557 = vrcp.pop %v556
    %v558 = vmul.f32 %v551, %v557
    %v559 = vmul.f32 %v553, %v557
    %560 = vst [vmem:[#allocation2] sm:$0xff] %v558
    %561 = vst [vmem:[#allocation2 + $0x8] sm:$0xff] %v559
    %v562 = vld [vmem:[%s1] sm:$0xff]
    %v563 = vmul.f32 %v562, 1.442695
    %v564 = vpow.pop %v563
    %566 = vset.pattern.permute.xlu0 0
    %567 = vperm.xlu0 %566, %v564
    %v568 = vpop.permute.xlu0 %567
    %v570 = vmul.f32 %v568, %v558
    %v571 = vmul.f32 %v568, %v559
    %572 = vst [vmem:[#allocation4] sm:$0xff] %v570
    %573 = vst [vmem:[#allocation4 + $0x8] sm:$0xff] %v571
    %574 = vst [vmem:[#allocation6] sm:$0xff] %v498
    %575 = vst [vmem:[#allocation6 + $0x8] sm:$0xff] %v500
    %576 = vst [vmem:[#allocation7] sm:$0xff] %v539
    %577 = vst [vmem:[#allocation7 + $0x8] sm:$0xff] %v541
    // Predicated region
    $region26: #{_expr_decoder_pallas.1} parent=1 // pred_check
      _
    $region27: #{_expr_decoder_pallas.1} parent=1 // pred_check_branch
      %579 = sbr.rel (0) target = $region29
    $region28: #{_expr_decoder_pallas.1} parent=1 // pred_region
      %s581 = ssub.s32 256, 256
      %582 = vsyncadd [#allocation3], %s581
      %s584 = sshll.u32 [#allocation2], 4
      %s585 = int_to_ptr.vmem [resolvable:$true] %s584
      %587 = dma.vmem_to_hbm [thread:$0]  %s585, 256, %s6, [#allocation3]
    $region29: #{_expr_decoder_pallas.1} parent=1 // pred_fallthru
      _
    // Predicated region
    $region30: #{_expr_decoder_pallas.1} parent=1 // pred_check
      _
    $region31: #{_expr_decoder_pallas.1} parent=1 // pred_check_branch
      %589 = sbr.rel (0) target = $region33
    $region32: #{_expr_decoder_pallas.1} parent=1 // pred_region
      %s591 = ssub.s32 256, 256
      %592 = vsyncadd [#allocation5], %s591
      %s594 = sshll.u32 [#allocation4], 4
      %s595 = int_to_ptr.vmem [resolvable:$true] %s594
      %597 = dma.vmem_to_hbm [thread:$0]  %s595, 256, %s7, [#allocation5]
    $region33: #{_expr_decoder_pallas.1} parent=1 // pred_fallthru
      _
    // Predicated region
    $region34: #{_expr_decoder_pallas.1} parent=1 // pred_check
      _
    $region35: #{_expr_decoder_pallas.1} parent=1 // pred_check_branch
      %599 = sbr.rel (0) target = $region37
    $region36: #{_expr_decoder_pallas.1} parent=1 // pred_region
      %s601 = ssub.s32 256, 256
      %602 = vsyncadd [#allocation5], %s601
      %s604 = sshll.u32 [#allocation6], 4
      %s605 = int_to_ptr.vmem [resolvable:$true] %s604
      %607 = dma.vmem_to_hbm [thread:$0]  %s605, 256, %s8, [#allocation5]
    $region37: #{_expr_decoder_pallas.1} parent=1 // pred_fallthru
      _
    // Predicated region
    $region38: #{_expr_decoder_pallas.1} parent=1 // pred_check
      _
    $region39: #{_expr_decoder_pallas.1} parent=1 // pred_check_branch
      %609 = sbr.rel (0) target = $region41
    $region40: #{_expr_decoder_pallas.1} parent=1 // pred_region
      %s611 = ssub.s32 256, 256
      %612 = vsyncadd [#allocation8], %s611
      %s614 = sshll.u32 [#allocation7], 4
      %s615 = int_to_ptr.vmem [resolvable:$true] %s614
      %617 = dma.vmem_to_hbm [thread:$0]  %s615, 256, %s9, [#allocation8]
    $region41: #{_expr_decoder_pallas.1} parent=1 // pred_fallthru
      _
    // Predicated region
    $region42: #{_expr_decoder_pallas.1} parent=1 // pred_check
      _
    $region43: #{_expr_decoder_pallas.1} parent=1 // pred_check_branch
      %619 = sbr.rel (0) target = $region45
    $region44: #{_expr_decoder_pallas.1} parent=1 // pred_region
      %620 = dma.done [#allocation3], 256
    $region45: #{_expr_decoder_pallas.1} parent=1 // pred_fallthru
      _
    // Predicated region
    $region46: #{_expr_decoder_pallas.1} parent=1 // pred_check
      _
    $region47: #{_expr_decoder_pallas.1} parent=1 // pred_check_branch
      %622 = sbr.rel (0) target = $region49
    $region48: #{_expr_decoder_pallas.1} parent=1 // pred_region
      %623 = dma.done [#allocation5], 256
    $region49: #{_expr_decoder_pallas.1} parent=1 // pred_fallthru
      _
    // Predicated region
    $region50: #{_expr_decoder_pallas.1} parent=1 // pred_check
      _
    $region51: #{_expr_decoder_pallas.1} parent=1 // pred_check_branch
      %625 = sbr.rel (0) target = $region53
    $region52: #{_expr_decoder_pallas.1} parent=1 // pred_region
      %626 = dma.done [#allocation5], 256
    $region53: #{_expr_decoder_pallas.1} parent=1 // pred_fallthru
      _
    // Predicated region
    $region54: #{_expr_decoder_pallas.1} parent=1 // pred_check
      _
    $region55: #{_expr_decoder_pallas.1} parent=1 // pred_check_branch
      %628 = sbr.rel (0) target = $region57
    $region56: #{_expr_decoder_pallas.1} parent=1 // pred_region
      %629 = dma.done [#allocation8], 256
    $region57: #{_expr_decoder_pallas.1} parent=1 // pred_fallthru
      _
    %630 = vsyncpa [#allocation3], 1
    %631 = vsyncpa [#allocation5], 1
    %632 = vsyncpa [#allocation8], 1

</llo_original>
